<compile_context>
chip_gen: v5e
topology: v5e:2x2
jax: 0.10.0
libtpu: 0.0.40
codegen_flags: <defaults>
</compile_context>

<pallas_src>
import jax
import jax.numpy as jnp
from jax.experimental import pallas as pl
from jax.experimental.pallas import tpu as pltpu


def _squeeze_copy_call(x2, m, n, chunks):
    """Grid-less pallas_call doing chunked HBM->HBM DMA copy of a (m, n) slab."""
    n_chunks = len(chunks)

    def kernel(x_ref, o_ref, sem):
        # Issue all chunk DMAs first (kept in flight concurrently), then wait.
        cps = []
        for c, (start, size) in enumerate(chunks):
            cp = pltpu.make_async_copy(
                x_ref.at[pl.ds(start, size), :],
                o_ref.at[pl.ds(start, size), :],
                sem.at[c],
            )
            cp.start()
            cps.append(cp)
        for cp in cps:
            cp.wait()

    return pl.pallas_call(
        kernel,
        out_shape=jax.ShapeDtypeStruct((m, n), x2.dtype),
        in_specs=[pl.BlockSpec(memory_space=pl.ANY)],
        out_specs=pl.BlockSpec(memory_space=pl.ANY),
        scratch_shapes=[pltpu.SemaphoreType.DMA((n_chunks,))],
    )(x2)


def squeeze_pallas(x, dim):
    """Pallas equivalent of torch.Tensor.squeeze(dim)."""
    ndim = x.ndim
    d = dim + ndim if dim < 0 else dim
    if not (0 <= d < ndim):
        raise ValueError(f"dim {dim} out of range for rank-{ndim} input")
    if x.shape[d] != 1:
        # torch.squeeze(x, dim) is a no-op when that dim is not size 1.
        return x

    out_shape = x.shape[:d] + x.shape[d + 1:]

    total = 1
    for s in out_shape:
        total *= s
    if total == 0:
        # Empty array: nothing to move.
        return x.reshape(out_shape)

    # Flatten the squeezed (contiguous) view to a 2-D (rows, cols) slab.
    # This reshape removes only a size-1 dim / merges leading dims, so it is
    # metadata-only; the DMA below does not care about lane layout.
    if len(out_shape) >= 2:
        n = out_shape[-1]
        m = total // n
    elif len(out_shape) == 1:
        m, n = 1, out_shape[0]
    else:
        m, n = 1, 1
    x2 = x.reshape(m, n)

    # Split the row axis into up to 4 independent DMAs (static chunk bounds).
    n_chunks = min(4, m)
    base, rem = divmod(m, n_chunks)
    chunks = []
    start = 0
    for c in range(n_chunks):
        size = base + (1 if c < rem else 0)
        chunks.append((start, size))
        start += size

    out2 = _squeeze_copy_call(x2, m, n, tuple(chunks))
    return out2.reshape(out_shape)


class SqueezeModule:
    """Mirror of the PyTorch nn.Module: Squeeze(dim)."""

    def __init__(self, dim):
        self.dim = dim

    def __call__(self, x):
        return squeeze_pallas(x, self.dim)


if __name__ == "__main__":
    key = jax.random.PRNGKey(0)

    # Input consistent with the module: a size-1 dim at position 1.
    x = jax.random.normal(key, (2, 1, 16, 16), jnp.float32)

    mod = SqueezeModule(dim=1)
    out = jax.block_until_ready(mod(x))

    ref = jnp.squeeze(x, axis=1)
    assert out.shape == (2, 16, 16), out.shape
    assert out.dtype == x.dtype
    assert bool(jnp.array_equal(out, ref)), "mismatch vs jnp.squeeze reference"

    # Negative dim + non-f32 dtype (DMA path is dtype/layout agnostic).
    y = jax.random.normal(key, (2, 16, 16, 1), jnp.float32).astype(jnp.bfloat16)
    out2 = jax.block_until_ready(squeeze_pallas(y, -1))
    assert out2.shape == (2, 16, 16)
    assert out2.dtype == jnp.bfloat16
    assert bool(jnp.array_equal(out2, jnp.squeeze(y, axis=-1)))

    # dim 0 has size 2 -> unchanged (PyTorch squeeze no-op semantics).
    z = squeeze_pallas(x, 0)
    assert z.shape == x.shape

    print("KERNEL_OK")
</pallas_src>

<mosaic_0001>
module attributes {stable_mosaic.version = 11 : i64} {
  func.func @kernel(%arg0: memref<32x16xf32, #tpu.memory_space<any>>, %arg1: memref<32x16xf32, #tpu.memory_space<any>>, %arg2: memref<4x!tpu.dma_semaphore, #tpu.memory_space<semaphore_mem>>) attributes {dimension_semantics = [], scalar_prefetch = 0 : i64, scratch_operands = 1 : i64, tpu.core_type = #tpu.core_type<tc>} {
    %c0_i32 = arith.constant 0 : i32
    %c0_i32_0 = arith.constant 0 : i32
    %c0_i32_1 = arith.constant 0 : i32
    %0 = tpu.memref_slice %arg0[%c0_i32_0, %c0_i32_1] : memref<32x16xf32, #tpu.memory_space<any>> -> memref<8x16xf32, #tpu.memory_space<any>>
    %c0_i32_2 = arith.constant 0 : i32
    %c0_i32_3 = arith.constant 0 : i32
    %1 = tpu.memref_slice %arg1[%c0_i32_2, %c0_i32_3] : memref<32x16xf32, #tpu.memory_space<any>> -> memref<8x16xf32, #tpu.memory_space<any>>
    %2 = tpu.memref_slice %arg2[%c0_i32] : memref<4x!tpu.dma_semaphore, #tpu.memory_space<semaphore_mem>> -> memref<1x!tpu.dma_semaphore, #tpu.memory_space<semaphore_mem>>
    %3 = tpu.memref_squeeze %2 : memref<1x!tpu.dma_semaphore, #tpu.memory_space<semaphore_mem>> -> memref<!tpu.dma_semaphore, #tpu.memory_space<semaphore_mem>>
    tpu.enqueue_dma source(%0 : memref<8x16xf32, #tpu.memory_space<any>>) target(%1 : memref<8x16xf32, #tpu.memory_space<any>>) target_semaphore(%3 : memref<!tpu.dma_semaphore, #tpu.memory_space<semaphore_mem>>)
    %c1_i32 = arith.constant 1 : i32
    %c8_i32 = arith.constant 8 : i32
    %c0_i32_4 = arith.constant 0 : i32
    %4 = tpu.memref_slice %arg0[%c8_i32, %c0_i32_4] : memref<32x16xf32, #tpu.memory_space<any>> -> memref<8x16xf32, #tpu.memory_space<any>>
    %c8_i32_5 = arith.constant 8 : i32
    %c0_i32_6 = arith.constant 0 : i32
    %5 = tpu.memref_slice %arg1[%c8_i32_5, %c0_i32_6] : memref<32x16xf32, #tpu.memory_space<any>> -> memref<8x16xf32, #tpu.memory_space<any>>
    %6 = tpu.memref_slice %arg2[%c1_i32] : memref<4x!tpu.dma_semaphore, #tpu.memory_space<semaphore_mem>> -> memref<1x!tpu.dma_semaphore, #tpu.memory_space<semaphore_mem>>
    %7 = tpu.memref_squeeze %6 : memref<1x!tpu.dma_semaphore, #tpu.memory_space<semaphore_mem>> -> memref<!tpu.dma_semaphore, #tpu.memory_space<semaphore_mem>>
    tpu.enqueue_dma source(%4 : memref<8x16xf32, #tpu.memory_space<any>>) target(%5 : memref<8x16xf32, #tpu.memory_space<any>>) target_semaphore(%7 : memref<!tpu.dma_semaphore, #tpu.memory_space<semaphore_mem>>)
    %c2_i32 = arith.constant 2 : i32
    %c16_i32 = arith.constant 16 : i32
    %c0_i32_7 = arith.constant 0 : i32
    %8 = tpu.memref_slice %arg0[%c16_i32, %c0_i32_7] : memref<32x16xf32, #tpu.memory_space<any>> -> memref<8x16xf32, #tpu.memory_space<any>>
    %c16_i32_8 = arith.constant 16 : i32
    %c0_i32_9 = arith.constant 0 : i32
    %9 = tpu.memref_slice %arg1[%c16_i32_8, %c0_i32_9] : memref<32x16xf32, #tpu.memory_space<any>> -> memref<8x16xf32, #tpu.memory_space<any>>
    %10 = tpu.memref_slice %arg2[%c2_i32] : memref<4x!tpu.dma_semaphore, #tpu.memory_space<semaphore_mem>> -> memref<1x!tpu.dma_semaphore, #tpu.memory_space<semaphore_mem>>
    %11 = tpu.memref_squeeze %10 : memref<1x!tpu.dma_semaphore, #tpu.memory_space<semaphore_mem>> -> memref<!tpu.dma_semaphore, #tpu.memory_space<semaphore_mem>>
    tpu.enqueue_dma source(%8 : memref<8x16xf32, #tpu.memory_space<any>>) target(%9 : memref<8x16xf32, #tpu.memory_space<any>>) target_semaphore(%11 : memref<!tpu.dma_semaphore, #tpu.memory_space<semaphore_mem>>)
    %c3_i32 = arith.constant 3 : i32
    %c24_i32 = arith.constant 24 : i32
    %c0_i32_10 = arith.constant 0 : i32
    %12 = tpu.memref_slice %arg0[%c24_i32, %c0_i32_10] : memref<32x16xf32, #tpu.memory_space<any>> -> memref<8x16xf32, #tpu.memory_space<any>>
    %c24_i32_11 = arith.constant 24 : i32
    %c0_i32_12 = arith.constant 0 : i32
    %13 = tpu.memref_slice %arg1[%c24_i32_11, %c0_i32_12] : memref<32x16xf32, #tpu.memory_space<any>> -> memref<8x16xf32, #tpu.memory_space<any>>
    %14 = tpu.memref_slice %arg2[%c3_i32] : memref<4x!tpu.dma_semaphore, #tpu.memory_space<semaphore_mem>> -> memref<1x!tpu.dma_semaphore, #tpu.memory_space<semaphore_mem>>
    %15 = tpu.memref_squeeze %14 : memref<1x!tpu.dma_semaphore, #tpu.memory_space<semaphore_mem>> -> memref<!tpu.dma_semaphore, #tpu.memory_space<semaphore_mem>>
    tpu.enqueue_dma source(%12 : memref<8x16xf32, #tpu.memory_space<any>>) target(%13 : memref<8x16xf32, #tpu.memory_space<any>>) target_semaphore(%15 : memref<!tpu.dma_semaphore, #tpu.memory_space<semaphore_mem>>)
    %c0_i32_13 = arith.constant 0 : i32
    %c0_i32_14 = arith.constant 0 : i32
    %c0_i32_15 = arith.constant 0 : i32
    %16 = tpu.memref_slice %arg0[%c0_i32_14, %c0_i32_15] : memref<32x16xf32, #tpu.memory_space<any>> -> memref<8x16xf32, #tpu.memory_space<any>>
    %c0_i32_16 = arith.constant 0 : i32
    %c0_i32_17 = arith.constant 0 : i32
    %17 = tpu.memref_slice %arg1[%c0_i32_16, %c0_i32_17] : memref<32x16xf32, #tpu.memory_space<any>> -> memref<8x16xf32, #tpu.memory_space<any>>
    %18 = tpu.memref_slice %arg2[%c0_i32_13] : memref<4x!tpu.dma_semaphore, #tpu.memory_space<semaphore_mem>> -> memref<1x!tpu.dma_semaphore, #tpu.memory_space<semaphore_mem>>
    %19 = tpu.memref_squeeze %18 : memref<1x!tpu.dma_semaphore, #tpu.memory_space<semaphore_mem>> -> memref<!tpu.dma_semaphore, #tpu.memory_space<semaphore_mem>>
    tpu.wait_dma2 semaphore(%19 : memref<!tpu.dma_semaphore, #tpu.memory_space<semaphore_mem>>) src(%16 : memref<8x16xf32, #tpu.memory_space<any>>) dst(%17 : memref<8x16xf32, #tpu.memory_space<any>>)
    %c1_i32_18 = arith.constant 1 : i32
    %c8_i32_19 = arith.constant 8 : i32
    %c0_i32_20 = arith.constant 0 : i32
    %20 = tpu.memref_slice %arg0[%c8_i32_19, %c0_i32_20] : memref<32x16xf32, #tpu.memory_space<any>> -> memref<8x16xf32, #tpu.memory_space<any>>
    %c8_i32_21 = arith.constant 8 : i32
    %c0_i32_22 = arith.constant 0 : i32
    %21 = tpu.memref_slice %arg1[%c8_i32_21, %c0_i32_22] : memref<32x16xf32, #tpu.memory_space<any>> -> memref<8x16xf32, #tpu.memory_space<any>>
    %22 = tpu.memref_slice %arg2[%c1_i32_18] : memref<4x!tpu.dma_semaphore, #tpu.memory_space<semaphore_mem>> -> memref<1x!tpu.dma_semaphore, #tpu.memory_space<semaphore_mem>>
    %23 = tpu.memref_squeeze %22 : memref<1x!tpu.dma_semaphore, #tpu.memory_space<semaphore_mem>> -> memref<!tpu.dma_semaphore, #tpu.memory_space<semaphore_mem>>
    tpu.wait_dma2 semaphore(%23 : memref<!tpu.dma_semaphore, #tpu.memory_space<semaphore_mem>>) src(%20 : memref<8x16xf32, #tpu.memory_space<any>>) dst(%21 : memref<8x16xf32, #tpu.memory_space<any>>)
    %c2_i32_23 = arith.constant 2 : i32
    %c16_i32_24 = arith.constant 16 : i32
    %c0_i32_25 = arith.constant 0 : i32
    %24 = tpu.memref_slice %arg0[%c16_i32_24, %c0_i32_25] : memref<32x16xf32, #tpu.memory_space<any>> -> memref<8x16xf32, #tpu.memory_space<any>>
    %c16_i32_26 = arith.constant 16 : i32
    %c0_i32_27 = arith.constant 0 : i32
    %25 = tpu.memref_slice %arg1[%c16_i32_26, %c0_i32_27] : memref<32x16xf32, #tpu.memory_space<any>> -> memref<8x16xf32, #tpu.memory_space<any>>
    %26 = tpu.memref_slice %arg2[%c2_i32_23] : memref<4x!tpu.dma_semaphore, #tpu.memory_space<semaphore_mem>> -> memref<1x!tpu.dma_semaphore, #tpu.memory_space<semaphore_mem>>
    %27 = tpu.memref_squeeze %26 : memref<1x!tpu.dma_semaphore, #tpu.memory_space<semaphore_mem>> -> memref<!tpu.dma_semaphore, #tpu.memory_space<semaphore_mem>>
    tpu.wait_dma2 semaphore(%27 : memref<!tpu.dma_semaphore, #tpu.memory_space<semaphore_mem>>) src(%24 : memref<8x16xf32, #tpu.memory_space<any>>) dst(%25 : memref<8x16xf32, #tpu.memory_space<any>>)
    %c3_i32_28 = arith.constant 3 : i32
    %c24_i32_29 = arith.constant 24 : i32
    %c0_i32_30 = arith.constant 0 : i32
    %28 = tpu.memref_slice %arg0[%c24_i32_29, %c0_i32_30] : memref<32x16xf32, #tpu.memory_space<any>> -> memref<8x16xf32, #tpu.memory_space<any>>
    %c24_i32_31 = arith.constant 24 : i32
    %c0_i32_32 = arith.constant 0 : i32
    %29 = tpu.memref_slice %arg1[%c24_i32_31, %c0_i32_32] : memref<32x16xf32, #tpu.memory_space<any>> -> memref<8x16xf32, #tpu.memory_space<any>>
    %30 = tpu.memref_slice %arg2[%c3_i32_28] : memref<4x!tpu.dma_semaphore, #tpu.memory_space<semaphore_mem>> -> memref<1x!tpu.dma_semaphore, #tpu.memory_space<semaphore_mem>>
    %31 = tpu.memref_squeeze %30 : memref<1x!tpu.dma_semaphore, #tpu.memory_space<semaphore_mem>> -> memref<!tpu.dma_semaphore, #tpu.memory_space<semaphore_mem>>
    tpu.wait_dma2 semaphore(%31 : memref<!tpu.dma_semaphore, #tpu.memory_space<semaphore_mem>>) src(%28 : memref<8x16xf32, #tpu.memory_space<any>>) dst(%29 : memref<8x16xf32, #tpu.memory_space<any>>)
    return
  }
}

</mosaic_0001>

<llo_original>
// kernel: tpu_custom_call.1
$region0: #{tpu_custom_call.1}
  #allocation0 [shape = 'u32[]', space=smem, size = 0x4, offset = 0x4, fixed_abs, tag = 'smem constant byte address 0x4 - core index']
  #allocation1 [shape = 'u32[72,128]{1,0:T(1,128)}', space=vmem, size = 0x9000, scoped, tag = 'internal scratch']
  #allocation2 [shape = 's32[4]{0}', space=sflag, size = 0x10, scoped, tag = 'scratch operand']
  #allocation3 [shape = 's32[]', space=sflag, size = 0x4, offset = 0, fixed_abs, tag = 'sflag constant byte address 0x0 - dummy sync flag']
  #allocation4 [shape = 's32[]', space=sflag, size = 0x4, offset = 0, fixed_abs, tag = 'sflag constant byte address 0x0 - dummy sync flag']
  #allocation5 [shape = 's32[]', space=sflag, size = 0x4, offset = 0, fixed_abs, tag = 'sflag constant byte address 0x0 - dummy sync flag']
  #allocation6 [shape = 's32[]', space=sflag, size = 0x4, offset = 0, fixed_abs, tag = 'sflag constant byte address 0x0 - dummy sync flag']
  %s0 = inlined_call_operand.vmem [shape: f32[32,16], index: 0, kind: input, shape index: {}]
  %s1 = inlined_call_operand.vmem [shape: f32[32,16], index: 1, kind: output, shape index: {}]
  %s2 = sld [smem:[#allocation0]]
  $region138: #{tpu_custom_call.1} parent=0
    _
  %s4 = ssub.s32 1, %s2
  %s5 = scalar_select 0, %s4, %s2
  // Predicated region
  $region2: #{tpu_custom_call.1} parent=0 // pred_check
    _
  $region3: #{tpu_custom_call.1} parent=0 // pred_check_branch
    %7 = sbr.rel (0) target = $region5
  $region4: #{tpu_custom_call.1} parent=0 // pred_region
    // Predicated region
    $region17: #{tpu_custom_call.1} parent=4 // pred_check
      _
    $region18: #{tpu_custom_call.1} parent=4 // pred_check_branch
      %23 = sbr.rel (0) target = $region20
    $region19: #{tpu_custom_call.1} parent=4 // pred_region
      loop: start=0, step=1, limit=1
      $region21: #{tpu_custom_call.1} parent=19 // loop_pre_header
        _
      $region22: #{tpu_custom_call.1} parent=19 // loop_header
        %s25 = sphi 0, %s29
        %p26 = scmp.ge.s32.totalorder %s25, 1
        %s30 = sphi %s0, %s0
        %s31 = sphi %s1, %s1
      $region23: #{tpu_custom_call.1} parent=19 // loop_header_branch
        %28 = sbr.rel (%p26) target = $region27
      $region24: #{tpu_custom_call.1} parent=19 // loop_body
        %v32 = vld [vmem:[%s30] sm:$0xff]
        %33 = vst [vmem:[%s31] sm:$0xff] %v32
      $region25: #{tpu_custom_call.1} parent=19 // loop_footer
        %s29 = sadd.s32 1, %s25
      $region26: #{tpu_custom_call.1} parent=19 // loop_footer_branch
        %24 = sbr.rel target = $region22
      $region27: #{tpu_custom_call.1} parent=19 // loop_exit
        _
    $region20: #{tpu_custom_call.1} parent=4 // pred_fallthru
      _
    // Predicated region
    $region28: #{tpu_custom_call.1} parent=4 // pred_check
      _
    $region29: #{tpu_custom_call.1} parent=4 // pred_check_branch
      %35 = sbr.rel target = $region31
    $region30: #{tpu_custom_call.1} parent=4 // pred_region
      _
    $region31: #{tpu_custom_call.1} parent=4 // pred_fallthru
      _
  $region5: #{tpu_custom_call.1} parent=0 // pred_fallthru
    _
  // Predicated region
  $region6: #{tpu_custom_call.1} parent=0 // pred_check
    _
  $region7: #{tpu_custom_call.1} parent=0 // pred_check_branch
    %9 = sbr.rel target = $region9
  $region8: #{tpu_custom_call.1} parent=0 // pred_region
    %s11 = ssub.s32 256, 1
    loop: start=0, step=1, limit=1
    $region10: #{tpu_custom_call.1} parent=8 // loop_pre_header
      _
    $region11: #{tpu_custom_call.1} parent=8 // loop_header
      %s13 = sphi 0, %s17
      %p14 = scmp.ge.s32.totalorder %s13, 1
      %s18 = sphi %s0, %s0
      %s19 = sphi %s1, %s1
    $region12: #{tpu_custom_call.1} parent=8 // loop_header_branch
      %16 = sbr.rel (%p14) target = $region16
    $region13: #{tpu_custom_call.1} parent=8 // loop_body
      %v20 = vld [vmem:[%s18] sm:%s11]
      %21 = vst [vmem:[%s19] sm:%s11] %v20
    $region14: #{tpu_custom_call.1} parent=8 // loop_footer
      %s17 = sadd.s32 1, %s13
    $region15: #{tpu_custom_call.1} parent=8 // loop_footer_branch
      %12 = sbr.rel target = $region11
    $region16: #{tpu_custom_call.1} parent=8 // loop_exit
      _
  $region9: #{tpu_custom_call.1} parent=0 // pred_fallthru
    _
  // Predicated region
  $region32: #{tpu_custom_call.1} parent=0 // pred_check
    _
  $region33: #{tpu_custom_call.1} parent=0 // pred_check_branch
    %38 = sbr.rel (0) target = $region35
  $region34: #{tpu_custom_call.1} parent=0 // pred_region
    %39 = vsyncadd [#allocation2], 128
  $region35: #{tpu_custom_call.1} parent=0 // pred_fallthru
    _
  %s40 = scalar_lea.vmem %s0, 8
  %s41 = scalar_lea.vmem %s1, 8
  %s42 = scalar_lea.sflag [#allocation2], 1
  // Predicated region
  $region36: #{tpu_custom_call.1} parent=0 // pred_check
    _
  $region37: #{tpu_custom_call.1} parent=0 // pred_check_branch
    %44 = sbr.rel (0) target = $region39
  $region38: #{tpu_custom_call.1} parent=0 // pred_region
    // Predicated region
    $region51: #{tpu_custom_call.1} parent=38 // pred_check
      _
    $region52: #{tpu_custom_call.1} parent=38 // pred_check_branch
      %60 = sbr.rel (0) target = $region54
    $region53: #{tpu_custom_call.1} parent=38 // pred_region
      loop: start=0, step=1, limit=1
      $region55: #{tpu_custom_call.1} parent=53 // loop_pre_header
        _
      $region56: #{tpu_custom_call.1} parent=53 // loop_header
        %s62 = sphi 0, %s66
        %p63 = scmp.ge.s32.totalorder %s62, 1
        %s67 = sphi %s40, %s40
        %s68 = sphi %s41, %s41
      $region57: #{tpu_custom_call.1} parent=53 // loop_header_branch
        %65 = sbr.rel (%p63) target = $region61
      $region58: #{tpu_custom_call.1} parent=53 // loop_body
        %v69 = vld [vmem:[%s67] sm:$0xff]
        %70 = vst [vmem:[%s68] sm:$0xff] %v69
      $region59: #{tpu_custom_call.1} parent=53 // loop_footer
        %s66 = sadd.s32 1, %s62
      $region60: #{tpu_custom_call.1} parent=53 // loop_footer_branch
        %61 = sbr.rel target = $region56
      $region61: #{tpu_custom_call.1} parent=53 // loop_exit
        _
    $region54: #{tpu_custom_call.1} parent=38 // pred_fallthru
      _
    // Predicated region
    $region62: #{tpu_custom_call.1} parent=38 // pred_check
      _
    $region63: #{tpu_custom_call.1} parent=38 // pred_check_branch
      %72 = sbr.rel target = $region65
    $region64: #{tpu_custom_call.1} parent=38 // pred_region
      _
    $region65: #{tpu_custom_call.1} parent=38 // pred_fallthru
      _
  $region39: #{tpu_custom_call.1} parent=0 // pred_fallthru
    _
  // Predicated region
  $region40: #{tpu_custom_call.1} parent=0 // pred_check
    _
  $region41: #{tpu_custom_call.1} parent=0 // pred_check_branch
    %46 = sbr.rel target = $region43
  $region42: #{tpu_custom_call.1} parent=0 // pred_region
    %s48 = ssub.s32 256, 1
    loop: start=0, step=1, limit=1
    $region44: #{tpu_custom_call.1} parent=42 // loop_pre_header
      _
    $region45: #{tpu_custom_call.1} parent=42 // loop_header
      %s50 = sphi 0, %s54
      %p51 = scmp.ge.s32.totalorder %s50, 1
      %s55 = sphi %s40, %s40
      %s56 = sphi %s41, %s41
    $region46: #{tpu_custom_call.1} parent=42 // loop_header_branch
      %53 = sbr.rel (%p51) target = $region50
    $region47: #{tpu_custom_call.1} parent=42 // loop_body
      %v57 = vld [vmem:[%s55] sm:%s48]
      %58 = vst [vmem:[%s56] sm:%s48] %v57
    $region48: #{tpu_custom_call.1} parent=42 // loop_footer
      %s54 = sadd.s32 1, %s50
    $region49: #{tpu_custom_call.1} parent=42 // loop_footer_branch
      %49 = sbr.rel target = $region45
    $region50: #{tpu_custom_call.1} parent=42 // loop_exit
      _
  $region43: #{tpu_custom_call.1} parent=0 // pred_fallthru
    _
  // Predicated region
  $region66: #{tpu_custom_call.1} parent=0 // pred_check
    _
  $region67: #{tpu_custom_call.1} parent=0 // pred_check_branch
    %75 = sbr.rel (0) target = $region69
  $region68: #{tpu_custom_call.1} parent=0 // pred_region
    %76 = vsyncadd %s42, 128
  $region69: #{tpu_custom_call.1} parent=0 // pred_fallthru
    _
  %s77 = scalar_lea.vmem %s0, 16
  %s78 = scalar_lea.vmem %s1, 16
  %s79 = scalar_lea.sflag [#allocation2], 2
  // Predicated region
  $region70: #{tpu_custom_call.1} parent=0 // pred_check
    _
  $region71: #{tpu_custom_call.1} parent=0 // pred_check_branch
    %81 = sbr.rel (0) target = $region73
  $region72: #{tpu_custom_call.1} parent=0 // pred_region
    // Predicated region
    $region85: #{tpu_custom_call.1} parent=72 // pred_check
      _
    $region86: #{tpu_custom_call.1} parent=72 // pred_check_branch
      %97 = sbr.rel (0) target = $region88
    $region87: #{tpu_custom_call.1} parent=72 // pred_region
      loop: start=0, step=1, limit=1
      $region89: #{tpu_custom_call.1} parent=87 // loop_pre_header
        _
      $region90: #{tpu_custom_call.1} parent=87 // loop_header
        %s99 = sphi 0, %s103
        %p100 = scmp.ge.s32.totalorder %s99, 1
        %s104 = sphi %s77, %s77
        %s105 = sphi %s78, %s78
      $region91: #{tpu_custom_call.1} parent=87 // loop_header_branch
        %102 = sbr.rel (%p100) target = $region95
      $region92: #{tpu_custom_call.1} parent=87 // loop_body
        %v106 = vld [vmem:[%s104] sm:$0xff]
        %107 = vst [vmem:[%s105] sm:$0xff] %v106
      $region93: #{tpu_custom_call.1} parent=87 // loop_footer
        %s103 = sadd.s32 1, %s99
      $region94: #{tpu_custom_call.1} parent=87 // loop_footer_branch
        %98 = sbr.rel target = $region90
      $region95: #{tpu_custom_call.1} parent=87 // loop_exit
        _
    $region88: #{tpu_custom_call.1} parent=72 // pred_fallthru
      _
    // Predicated region
    $region96: #{tpu_custom_call.1} parent=72 // pred_check
      _
    $region97: #{tpu_custom_call.1} parent=72 // pred_check_branch
      %109 = sbr.rel target = $region99
    $region98: #{tpu_custom_call.1} parent=72 // pred_region
      _
    $region99: #{tpu_custom_call.1} parent=72 // pred_fallthru
      _
  $region73: #{tpu_custom_call.1} parent=0 // pred_fallthru
    _
  // Predicated region
  $region74: #{tpu_custom_call.1} parent=0 // pred_check
    _
  $region75: #{tpu_custom_call.1} parent=0 // pred_check_branch
    %83 = sbr.rel target = $region77
  $region76: #{tpu_custom_call.1} parent=0 // pred_region
    %s85 = ssub.s32 256, 1
    loop: start=0, step=1, limit=1
    $region78: #{tpu_custom_call.1} parent=76 // loop_pre_header
      _
    $region79: #{tpu_custom_call.1} parent=76 // loop_header
      %s87 = sphi 0, %s91
      %p88 = scmp.ge.s32.totalorder %s87, 1
      %s92 = sphi %s77, %s77
      %s93 = sphi %s78, %s78
    $region80: #{tpu_custom_call.1} parent=76 // loop_header_branch
      %90 = sbr.rel (%p88) target = $region84
    $region81: #{tpu_custom_call.1} parent=76 // loop_body
      %v94 = vld [vmem:[%s92] sm:%s85]
      %95 = vst [vmem:[%s93] sm:%s85] %v94
    $region82: #{tpu_custom_call.1} parent=76 // loop_footer
      %s91 = sadd.s32 1, %s87
    $region83: #{tpu_custom_call.1} parent=76 // loop_footer_branch
      %86 = sbr.rel target = $region79
    $region84: #{tpu_custom_call.1} parent=76 // loop_exit
      _
  $region77: #{tpu_custom_call.1} parent=0 // pred_fallthru
    _
  // Predicated region
  $region100: #{tpu_custom_call.1} parent=0 // pred_check
    _
  $region101: #{tpu_custom_call.1} parent=0 // pred_check_branch
    %112 = sbr.rel (0) target = $region103
  $region102: #{tpu_custom_call.1} parent=0 // pred_region
    %113 = vsyncadd %s79, 128
  $region103: #{tpu_custom_call.1} parent=0 // pred_fallthru
    _
  %s114 = scalar_lea.vmem %s0, 24
  %s115 = scalar_lea.vmem %s1, 24
  %s116 = scalar_lea.sflag [#allocation2], 3
  // Predicated region
  $region104: #{tpu_custom_call.1} parent=0 // pred_check
    _
  $region105: #{tpu_custom_call.1} parent=0 // pred_check_branch
    %118 = sbr.rel (0) target = $region107
  $region106: #{tpu_custom_call.1} parent=0 // pred_region
    // Predicated region
    $region119: #{tpu_custom_call.1} parent=106 // pred_check
      _
    $region120: #{tpu_custom_call.1} parent=106 // pred_check_branch
      %134 = sbr.rel (0) target = $region122
    $region121: #{tpu_custom_call.1} parent=106 // pred_region
      loop: start=0, step=1, limit=1
      $region123: #{tpu_custom_call.1} parent=121 // loop_pre_header
        _
      $region124: #{tpu_custom_call.1} parent=121 // loop_header
        %s136 = sphi 0, %s140
        %p137 = scmp.ge.s32.totalorder %s136, 1
        %s141 = sphi %s114, %s114
        %s142 = sphi %s115, %s115
      $region125: #{tpu_custom_call.1} parent=121 // loop_header_branch
        %139 = sbr.rel (%p137) target = $region129
      $region126: #{tpu_custom_call.1} parent=121 // loop_body
        %v143 = vld [vmem:[%s141] sm:$0xff]
        %144 = vst [vmem:[%s142] sm:$0xff] %v143
      $region127: #{tpu_custom_call.1} parent=121 // loop_footer
        %s140 = sadd.s32 1, %s136
      $region128: #{tpu_custom_call.1} parent=121 // loop_footer_branch
        %135 = sbr.rel target = $region124
      $region129: #{tpu_custom_call.1} parent=121 // loop_exit
        _
    $region122: #{tpu_custom_call.1} parent=106 // pred_fallthru
      _
    // Predicated region
    $region130: #{tpu_custom_call.1} parent=106 // pred_check
      _
    $region131: #{tpu_custom_call.1} parent=106 // pred_check_branch
      %146 = sbr.rel target = $region133
    $region132: #{tpu_custom_call.1} parent=106 // pred_region
      _
    $region133: #{tpu_custom_call.1} parent=106 // pred_fallthru
      _
  $region107: #{tpu_custom_call.1} parent=0 // pred_fallthru
    _
  // Predicated region
  $region108: #{tpu_custom_call.1} parent=0 // pred_check
    _
  $region109: #{tpu_custom_call.1} parent=0 // pred_check_branch
    %120 = sbr.rel target = $region111
  $region110: #{tpu_custom_call.1} parent=0 // pred_region
    %s122 = ssub.s32 256, 1
    loop: start=0, step=1, limit=1
    $region112: #{tpu_custom_call.1} parent=110 // loop_pre_header
      _
    $region113: #{tpu_custom_call.1} parent=110 // loop_header
      %s124 = sphi 0, %s128
      %p125 = scmp.ge.s32.totalorder %s124, 1
      %s129 = sphi %s114, %s114
      %s130 = sphi %s115, %s115
    $region114: #{tpu_custom_call.1} parent=110 // loop_header_branch
      %127 = sbr.rel (%p125) target = $region118
    $region115: #{tpu_custom_call.1} parent=110 // loop_body
      %v131 = vld [vmem:[%s129] sm:%s122]
      %132 = vst [vmem:[%s130] sm:%s122] %v131
    $region116: #{tpu_custom_call.1} parent=110 // loop_footer
      %s128 = sadd.s32 1, %s124
    $region117: #{tpu_custom_call.1} parent=110 // loop_footer_branch
      %123 = sbr.rel target = $region113
    $region118: #{tpu_custom_call.1} parent=110 // loop_exit
      _
  $region111: #{tpu_custom_call.1} parent=0 // pred_fallthru
    _
  // Predicated region
  $region134: #{tpu_custom_call.1} parent=0 // pred_check
    _
  $region135: #{tpu_custom_call.1} parent=0 // pred_check_branch
    %149 = sbr.rel (0) target = $region137
  $region136: #{tpu_custom_call.1} parent=0 // pred_region
    %150 = vsyncadd %s116, 128
  $region137: #{tpu_custom_call.1} parent=0 // pred_fallthru
    _
  %s151 = smul.u32 8, 1
  %s152 = sshll.u32 %s151, 4
  %153 = dma.done [#allocation2], %s152
  %s154 = sshll.u32 %s151, 4
  %155 = dma.done %s42, %s154
  %s156 = sshll.u32 %s151, 4
  %157 = dma.done %s79, %s156
  %s158 = sshll.u32 %s151, 4
  %159 = dma.done %s116, %s158
  %160 = vsyncmov [#allocation2]
  %s161 = vpop.sfrf %160
  %p162 = scmp.eq.s32.totalorder %s161, 0
  %p163 = pneg %p162
  %165 = shalt.err (%p163)
  %s166 = scalar_lea.sflag [#allocation2], 1
  %167 = vsyncmov %s166
  %s168 = vpop.sfrf %167
  %p169 = scmp.eq.s32.totalorder %s168, 0
  %p170 = pneg %p169
  %172 = shalt.err (%p170)
  %s173 = scalar_lea.sflag [#allocation2], 2
  %174 = vsyncmov %s173
  %s175 = vpop.sfrf %174
  %p176 = scmp.eq.s32.totalorder %s175, 0
  %p177 = pneg %p176
  %179 = shalt.err (%p177)
  %s180 = scalar_lea.sflag [#allocation2], 3
  %181 = vsyncmov %s180
  %s182 = vpop.sfrf %181
  %p183 = scmp.eq.s32.totalorder %s182, 0
  %p184 = pneg %p183
  %186 = shalt.err (%p184)

</llo_original>
